<compile_context>
chip_gen: v6e
topology: v6e:2x2x1
jax: 0.10.0
libtpu: 0.0.40
codegen_flags: <defaults>
</compile_context>

<pallas_src>
import functools
import math

import jax
import jax.numpy as jnp
from jax.experimental import pallas as pl
from jax.experimental.pallas import tpu as pltpu

_LANES = 128
_SUBLANES = 8


def _round_up(x, m):
    return (x + m - 1) // m * m


def _vmem_capacity_bytes():
    try:
        return int(pltpu.get_tpu_info().vmem_capacity_bytes)
    except Exception:
        return 64 << 20          # conservative fallback: v7x per-core VMEM


def _vmem_limit_bytes():
    # Half of physical VMEM: 64 MiB on v5e/v6e (128 MiB phys), 32 MiB on v7x.
    return int(min(_vmem_capacity_bytes() // 2, 96 << 20))


def _pick_batch_block(B, N_pad, block_b=None):
    """Choose (bB, B_pad).  bB is either B (single full block, always legal)
    or a multiple of 128 so the lane-tiling rule holds for split blocks."""
    if block_b is not None:
        bB = int(block_b)
        assert bB == B or bB % _LANES == 0, (
            "block_b must equal B or be a multiple of 128 (lane tiling rule)")
        return bB, _round_up(B, bB)

    budget = max(8 << 20, _vmem_limit_bytes() // 2)   # per-block intermediates
    # ~5 live f32 (N_pad, bB) slabs per row iteration + resident column
    # operands + double-buffered input blocks -> ~12 f32 "rows" per lane.
    bytes_per_lane = 4 * N_pad * 12

    if B <= _LANES or (B < 2 * _LANES and B * bytes_per_lane <= budget):
        return B, B              # single block; block == full dim is legal

    B_pad = _round_up(B, _LANES)
    nb = B_pad // _LANES                       # number of 128-lane groups
    cap_groups = max(1, budget // (bytes_per_lane * _LANES))
    # Guarantee >= 2 grid steps so "parallel" can use both v7x TensorCores.
    k_cap = max(1, min(cap_groups, max(1, nb // 2)))
    k = max(d for d in range(1, k_cap + 1) if nb % d == 0)
    return k * _LANES, B_pad


def _ranknet_kernel(tgt_ref, score_ref, out_ref, *, sigma, n_pos, n_cols,
                    n_batch):
    """tgt_ref / score_ref: (N_pad, bB) blocks with the batch on the lane axis."""
    N_pad, bB = tgt_ref.shape

    tgt_cols = tgt_ref[...].astype(jnp.float32)            # (N_pad, bB)
    sc_cols = score_ref[...].astype(jnp.float32) * sigma   # pre-scaled once

    # Row-independent masks, computed once per block:
    #   * padded list positions (col >= n_cols)
    #   * padded batch lanes    (global batch index >= n_batch)
    col = jax.lax.broadcasted_iota(jnp.int32, (N_pad, 1), 0)
    lane = jax.lax.broadcasted_iota(jnp.int32, (1, bB), 1)
    lane_valid = (pl.program_id(0) * bB + lane) < n_batch
    base_keep = (col < n_cols) & lane_valid                 # (N_pad, bB)

    def row_term(i):
        # Row operands: one (1, bB) read broadcast along sublanes (cheap),
        # no lane<->sublane transpose.
        t_row = tgt_ref[pl.ds(i, 1), :].astype(jnp.float32)
        s_row = score_ref[pl.ds(i, 1), :].astype(jnp.float32) * sigma
        t_diff = t_row - tgt_cols                           # (N_pad, bB)
        s_diff = s_row - sc_cols
        # x = sigmoid(.) is in (0,1) so max(x,0)=x and |x|=x:
        #   bce = x*(1-t) + log(1+exp(-x))
        x = jax.nn.sigmoid(s_diff)
        t = jnp.where(t_diff > 0, 1.0, jnp.where(t_diff < 0, 0.0, 0.5))
        bce = x * (1.0 - t) + jnp.log(1.0 + jnp.exp(-x))
        keep = base_keep & (col > i)       # strictly-upper-triangular rows
        return jnp.sum(jnp.where(keep, bce, 0.0))

    if n_pos <= 8:                          # tiny: unroll at trace time
        partial = jnp.float32(0.0)
        for i in range(n_pos):
            partial = partial + row_term(i)
    else:                                   # bounds live ranges for big n_pos
        partial = jax.lax.fori_loop(
            0, n_pos, lambda i, acc: acc + row_term(i), jnp.float32(0.0))

    # Lane-dense (1, 1, 128) store; the wrapper reads lane 0 of each block.
    out_ref[...] = jnp.broadcast_to(partial.reshape(1, 1, 1), out_ref.shape)


def ranknet_loss(tgt_score, score, *, n_pos, sigma=1.0, block_b=None):
    """tgt_score, score: (B, N) float arrays.  Returns the scalar f32 loss."""
    assert tgt_score.shape == score.shape and tgt_score.ndim == 2
    B, N = tgt_score.shape
    n_pos_eff = min(int(n_pos), N)

    # Each masked-out pair contributes exactly log(2) = softplus(0) to the
    # BCE 'sum' (x = 0, t = 0); the count is identical for every list.
    in_mask_per_list = n_pos_eff * N - n_pos_eff * (n_pos_eff + 1) // 2
    masked_const = jnp.float32(math.log(2.0) * (N * N - in_mask_per_list))

    if n_pos_eff == 0:                      # degenerate: everything masked
        return masked_const

    N_pad = _round_up(N, _SUBLANES)
    bB, B_pad = _pick_batch_block(B, N_pad, block_b)
    num_blocks = B_pad // bB

    # Lane-dense layout: (B, N) -> (N_pad, B_pad) with the batch on lanes.
    def _prep(x):
        xt = x.astype(jnp.float32).T
        return jnp.pad(xt, ((0, N_pad - N), (0, B_pad - B)))

    kernel = functools.partial(
        _ranknet_kernel, sigma=float(sigma), n_pos=n_pos_eff,
        n_cols=N, n_batch=B)

    partials = pl.pallas_call(
        kernel,
        out_shape=jax.ShapeDtypeStruct((num_blocks, 1, _LANES), jnp.float32),
        grid=(num_blocks,),
        in_specs=[
            pl.BlockSpec((N_pad, bB), lambda b: (0, b)),
            pl.BlockSpec((N_pad, bB), lambda b: (0, b)),
        ],
        out_specs=pl.BlockSpec((1, 1, _LANES), lambda b: (b, 0, 0)),
        compiler_params=pltpu.CompilerParams(
            dimension_semantics=("parallel",),
            vmem_limit_bytes=_vmem_limit_bytes(),
        ),
    )(_prep(tgt_score), _prep(score))

    return jnp.sum(partials[:, 0, 0]) / B + masked_const


def _ranknet_ref(tgt_score, score, *, n_pos, sigma=1.0):
    # Pure-JAX reference mirroring the PyTorch forward, for validation.
    B, N = tgt_score.shape
    t_diff = tgt_score[:, :, None] - tgt_score[:, None, :]
    s_diff = score[:, :, None] - score[:, None, :]
    row = jnp.arange(N)[:, None]
    col = jnp.arange(N)[None, :]
    mask = (row < n_pos) & (col > row)
    x = jnp.where(mask, jax.nn.sigmoid(sigma * s_diff), 0.0)
    t = jnp.where(mask, (jnp.sign(t_diff) + 1.0) / 2.0, 0.0)
    bce = jnp.maximum(x, 0.0) - x * t + jnp.log1p(jnp.exp(-jnp.abs(x)))
    return jnp.sum(bce) / B


if __name__ == "__main__":
    B, N = 2, 16      # batch of 2 lists, 16 docs each
    n_pos, sigma = 4, 1.0

    key = jax.random.PRNGKey(0)
    k1, k2 = jax.random.split(key)
    tgt_score = jax.random.normal(k1, (B, N), dtype=jnp.float32)
    score = jax.random.normal(k2, (B, N), dtype=jnp.float32)

    loss = ranknet_loss(tgt_score, score, n_pos=n_pos, sigma=sigma)
    loss = jax.block_until_ready(loss)

    ref = _ranknet_ref(tgt_score, score, n_pos=n_pos, sigma=sigma)
    assert jnp.allclose(loss, ref, rtol=1e-5, atol=1e-4), (loss, ref)

    print("KERNEL_OK")
</pallas_src>

<mosaic_0001>
module attributes {stable_mosaic.version = 11 : i64} {
  func.func @_ranknet_kernel(%arg0: i32, %arg1: memref<16x2xf32, #tpu.memory_space<vmem>>, %arg2: memref<16x2xf32, #tpu.memory_space<vmem>>, %arg3: memref<1x1x128xf32, #tpu.memory_space<vmem>>) attributes {dimension_semantics = [#tpu.dimension_semantics<parallel>], iteration_bounds = array<i64: 1>, scalar_prefetch = 0 : i64, scratch_operands = 0 : i64, tpu.core_type = #tpu.core_type<tc>, window_params = [{transform_indices = @transform_0, window_bounds = array<i64: 16, 2>}, {transform_indices = @transform_1, window_bounds = array<i64: 16, 2>}, {transform_indices = @transform_2, window_bounds = array<i64: 1, 1, 128>}]} {
    %c0 = arith.constant 0 : index
    %c0_0 = arith.constant 0 : index
    %0 = vector.load %arg1[%c0, %c0_0] : memref<16x2xf32, #tpu.memory_space<vmem>>, vector<16x2xf32>
    %c0_1 = arith.constant 0 : index
    %c0_2 = arith.constant 0 : index
    %1 = vector.load %arg2[%c0_1, %c0_2] : memref<16x2xf32, #tpu.memory_space<vmem>>, vector<16x2xf32>
    %cst = arith.constant 1.000000e+00 : f32
    %2 = vector.broadcast %cst : f32 to vector<16x2xf32>
    %3 = arith.mulf %1, %2 : vector<16x2xf32>
    %4 = tpu.iota {dimensions = array<i32: 0>} : vector<16x1xi32>
    %5 = tpu.iota {dimensions = array<i32: 1>} : vector<1x2xi32>
    %c2_i32 = arith.constant 2 : i32
    %6 = arith.muli %arg0, %c2_i32 : i32
    %7 = vector.broadcast %6 : i32 to vector<1x2xi32>
    %8 = arith.addi %7, %5 : vector<1x2xi32>
    %c2_i32_3 = arith.constant 2 : i32
    %9 = vector.broadcast %c2_i32_3 : i32 to vector<1x2xi32>
    %10 = arith.cmpi slt, %8, %9 : vector<1x2xi32>
    %c16_i32 = arith.constant 16 : i32
    %11 = vector.broadcast %c16_i32 : i32 to vector<16x1xi32>
    %12 = arith.cmpi slt, %4, %11 : vector<16x1xi32>
    %13 = vector.broadcast %12 : vector<16x1xi1> to vector<16x2xi1>
    %14 = vector.broadcast %10 : vector<1x2xi1> to vector<16x2xi1>
    %15 = arith.andi %13, %14 : vector<16x2xi1>
    %c0_4 = arith.constant 0 : index
    %c0_5 = arith.constant 0 : index
    %16 = vector.load %arg1[%c0_4, %c0_5] : memref<16x2xf32, #tpu.memory_space<vmem>>, vector<1x2xf32>
    %c0_6 = arith.constant 0 : index
    %c0_7 = arith.constant 0 : index
    %17 = vector.load %arg2[%c0_6, %c0_7] : memref<16x2xf32, #tpu.memory_space<vmem>>, vector<1x2xf32>
    %cst_8 = arith.constant 1.000000e+00 : f32
    %18 = vector.broadcast %cst_8 : f32 to vector<1x2xf32>
    %19 = arith.mulf %17, %18 : vector<1x2xf32>
    %20 = vector.broadcast %16 : vector<1x2xf32> to vector<16x2xf32>
    %21 = arith.subf %20, %0 : vector<16x2xf32>
    %22 = vector.broadcast %19 : vector<1x2xf32> to vector<16x2xf32>
    %23 = arith.subf %22, %3 : vector<16x2xf32>
    %24 = arith.negf %23 : vector<16x2xf32>
    %25 = math.exp %24 : vector<16x2xf32>
    %cst_9 = arith.constant 1.000000e+00 : f32
    %26 = vector.broadcast %cst_9 : f32 to vector<16x2xf32>
    %27 = arith.addf %26, %25 : vector<16x2xf32>
    %28 = arith.divf %26, %27 : vector<16x2xf32>
    %cst_10 = arith.constant 0.000000e+00 : f32
    %29 = vector.broadcast %cst_10 : f32 to vector<16x2xf32>
    %30 = arith.cmpf ogt, %21, %29 : vector<16x2xf32>
    %cst_11 = arith.constant 0.000000e+00 : f32
    %31 = vector.broadcast %cst_11 : f32 to vector<16x2xf32>
    %32 = arith.cmpf olt, %21, %31 : vector<16x2xf32>
    %cst_12 = arith.constant 0.000000e+00 : f32
    %cst_13 = arith.constant 5.000000e-01 : f32
    %33 = vector.broadcast %cst_12 : f32 to vector<16x2xf32>
    %34 = vector.broadcast %cst_13 : f32 to vector<16x2xf32>
    %35 = arith.select %32, %33, %34 : vector<16x2xi1>, vector<16x2xf32>
    %cst_14 = arith.constant 1.000000e+00 : f32
    %36 = vector.broadcast %cst_14 : f32 to vector<16x2xf32>
    %37 = arith.select %30, %36, %35 : vector<16x2xi1>, vector<16x2xf32>
    %cst_15 = arith.constant 1.000000e+00 : f32
    %38 = vector.broadcast %cst_15 : f32 to vector<16x2xf32>
    %39 = arith.subf %38, %37 : vector<16x2xf32>
    %40 = arith.mulf %28, %39 : vector<16x2xf32>
    %cst_16 = arith.constant 0.000000e+00 : f32
    %41 = vector.broadcast %cst_16 : f32 to vector<16x2xf32>
    %42 = arith.subf %41, %28 : vector<16x2xf32>
    %43 = math.exp %42 : vector<16x2xf32>
    %cst_17 = arith.constant 1.000000e+00 : f32
    %44 = vector.broadcast %cst_17 : f32 to vector<16x2xf32>
    %45 = arith.addf %44, %43 : vector<16x2xf32>
    %46 = math.log %45 : vector<16x2xf32>
    %47 = arith.addf %40, %46 : vector<16x2xf32>
    %c0_i32 = arith.constant 0 : i32
    %48 = vector.broadcast %c0_i32 : i32 to vector<16x1xi32>
    %49 = arith.cmpi sgt, %4, %48 : vector<16x1xi32>
    %50 = vector.broadcast %49 : vector<16x1xi1> to vector<16x2xi1>
    %51 = arith.andi %15, %50 : vector<16x2xi1>
    %cst_18 = arith.constant 0.000000e+00 : f32
    %52 = vector.broadcast %cst_18 : f32 to vector<16x2xf32>
    %53 = arith.select %51, %47, %52 : vector<16x2xi1>, vector<16x2xf32>
    %54 = vector.shape_cast %53 : vector<16x2xf32> to vector<1x16x2xf32>
    %cst_19 = arith.constant dense<0.000000e+00> : vector<1xf32>
    %55 = vector.multi_reduction <add>, %54, %cst_19 [1, 2] : vector<1x16x2xf32> to vector<1xf32>
    %56 = vector.shape_cast %55 : vector<1xf32> to vector<1x1x1xf32>
    %57 = vector.extract %56[0, 0, 0] : f32 from vector<1x1x1xf32>
    %cst_20 = arith.constant 0.000000e+00 : f32
    %58 = arith.addf %cst_20, %57 : f32
    %c1 = arith.constant 1 : index
    %c0_21 = arith.constant 0 : index
    %59 = vector.load %arg1[%c1, %c0_21] : memref<16x2xf32, #tpu.memory_space<vmem>>, vector<1x2xf32>
    %c1_22 = arith.constant 1 : index
    %c0_23 = arith.constant 0 : index
    %60 = vector.load %arg2[%c1_22, %c0_23] : memref<16x2xf32, #tpu.memory_space<vmem>>, vector<1x2xf32>
    %cst_24 = arith.constant 1.000000e+00 : f32
    %61 = vector.broadcast %cst_24 : f32 to vector<1x2xf32>
    %62 = arith.mulf %60, %61 : vector<1x2xf32>
    %63 = vector.broadcast %59 : vector<1x2xf32> to vector<16x2xf32>
    %64 = arith.subf %63, %0 : vector<16x2xf32>
    %65 = vector.broadcast %62 : vector<1x2xf32> to vector<16x2xf32>
    %66 = arith.subf %65, %3 : vector<16x2xf32>
    %67 = arith.negf %66 : vector<16x2xf32>
    %68 = math.exp %67 : vector<16x2xf32>
    %cst_25 = arith.constant 1.000000e+00 : f32
    %69 = vector.broadcast %cst_25 : f32 to vector<16x2xf32>
    %70 = arith.addf %69, %68 : vector<16x2xf32>
    %71 = arith.divf %69, %70 : vector<16x2xf32>
    %cst_26 = arith.constant 0.000000e+00 : f32
    %72 = vector.broadcast %cst_26 : f32 to vector<16x2xf32>
    %73 = arith.cmpf ogt, %64, %72 : vector<16x2xf32>
    %cst_27 = arith.constant 0.000000e+00 : f32
    %74 = vector.broadcast %cst_27 : f32 to vector<16x2xf32>
    %75 = arith.cmpf olt, %64, %74 : vector<16x2xf32>
    %cst_28 = arith.constant 0.000000e+00 : f32
    %cst_29 = arith.constant 5.000000e-01 : f32
    %76 = vector.broadcast %cst_28 : f32 to vector<16x2xf32>
    %77 = vector.broadcast %cst_29 : f32 to vector<16x2xf32>
    %78 = arith.select %75, %76, %77 : vector<16x2xi1>, vector<16x2xf32>
    %cst_30 = arith.constant 1.000000e+00 : f32
    %79 = vector.broadcast %cst_30 : f32 to vector<16x2xf32>
    %80 = arith.select %73, %79, %78 : vector<16x2xi1>, vector<16x2xf32>
    %cst_31 = arith.constant 1.000000e+00 : f32
    %81 = vector.broadcast %cst_31 : f32 to vector<16x2xf32>
    %82 = arith.subf %81, %80 : vector<16x2xf32>
    %83 = arith.mulf %71, %82 : vector<16x2xf32>
    %cst_32 = arith.constant 0.000000e+00 : f32
    %84 = vector.broadcast %cst_32 : f32 to vector<16x2xf32>
    %85 = arith.subf %84, %71 : vector<16x2xf32>
    %86 = math.exp %85 : vector<16x2xf32>
    %cst_33 = arith.constant 1.000000e+00 : f32
    %87 = vector.broadcast %cst_33 : f32 to vector<16x2xf32>
    %88 = arith.addf %87, %86 : vector<16x2xf32>
    %89 = math.log %88 : vector<16x2xf32>
    %90 = arith.addf %83, %89 : vector<16x2xf32>
    %c1_i32 = arith.constant 1 : i32
    %91 = vector.broadcast %c1_i32 : i32 to vector<16x1xi32>
    %92 = arith.cmpi sgt, %4, %91 : vector<16x1xi32>
    %93 = vector.broadcast %92 : vector<16x1xi1> to vector<16x2xi1>
    %94 = arith.andi %15, %93 : vector<16x2xi1>
    %cst_34 = arith.constant 0.000000e+00 : f32
    %95 = vector.broadcast %cst_34 : f32 to vector<16x2xf32>
    %96 = arith.select %94, %90, %95 : vector<16x2xi1>, vector<16x2xf32>
    %97 = vector.shape_cast %96 : vector<16x2xf32> to vector<1x16x2xf32>
    %cst_35 = arith.constant dense<0.000000e+00> : vector<1xf32>
    %98 = vector.multi_reduction <add>, %97, %cst_35 [1, 2] : vector<1x16x2xf32> to vector<1xf32>
    %99 = vector.shape_cast %98 : vector<1xf32> to vector<1x1x1xf32>
    %100 = vector.extract %99[0, 0, 0] : f32 from vector<1x1x1xf32>
    %101 = arith.addf %58, %100 : f32
    %c2 = arith.constant 2 : index
    %c0_36 = arith.constant 0 : index
    %102 = vector.load %arg1[%c2, %c0_36] : memref<16x2xf32, #tpu.memory_space<vmem>>, vector<1x2xf32>
    %c2_37 = arith.constant 2 : index
    %c0_38 = arith.constant 0 : index
    %103 = vector.load %arg2[%c2_37, %c0_38] : memref<16x2xf32, #tpu.memory_space<vmem>>, vector<1x2xf32>
    %cst_39 = arith.constant 1.000000e+00 : f32
    %104 = vector.broadcast %cst_39 : f32 to vector<1x2xf32>
    %105 = arith.mulf %103, %104 : vector<1x2xf32>
    %106 = vector.broadcast %102 : vector<1x2xf32> to vector<16x2xf32>
    %107 = arith.subf %106, %0 : vector<16x2xf32>
    %108 = vector.broadcast %105 : vector<1x2xf32> to vector<16x2xf32>
    %109 = arith.subf %108, %3 : vector<16x2xf32>
    %110 = arith.negf %109 : vector<16x2xf32>
    %111 = math.exp %110 : vector<16x2xf32>
    %cst_40 = arith.constant 1.000000e+00 : f32
    %112 = vector.broadcast %cst_40 : f32 to vector<16x2xf32>
    %113 = arith.addf %112, %111 : vector<16x2xf32>
    %114 = arith.divf %112, %113 : vector<16x2xf32>
    %cst_41 = arith.constant 0.000000e+00 : f32
    %115 = vector.broadcast %cst_41 : f32 to vector<16x2xf32>
    %116 = arith.cmpf ogt, %107, %115 : vector<16x2xf32>
    %cst_42 = arith.constant 0.000000e+00 : f32
    %117 = vector.broadcast %cst_42 : f32 to vector<16x2xf32>
    %118 = arith.cmpf olt, %107, %117 : vector<16x2xf32>
    %cst_43 = arith.constant 0.000000e+00 : f32
    %cst_44 = arith.constant 5.000000e-01 : f32
    %119 = vector.broadcast %cst_43 : f32 to vector<16x2xf32>
    %120 = vector.broadcast %cst_44 : f32 to vector<16x2xf32>
    %121 = arith.select %118, %119, %120 : vector<16x2xi1>, vector<16x2xf32>
    %cst_45 = arith.constant 1.000000e+00 : f32
    %122 = vector.broadcast %cst_45 : f32 to vector<16x2xf32>
    %123 = arith.select %116, %122, %121 : vector<16x2xi1>, vector<16x2xf32>
    %cst_46 = arith.constant 1.000000e+00 : f32
    %124 = vector.broadcast %cst_46 : f32 to vector<16x2xf32>
    %125 = arith.subf %124, %123 : vector<16x2xf32>
    %126 = arith.mulf %114, %125 : vector<16x2xf32>
    %cst_47 = arith.constant 0.000000e+00 : f32
    %127 = vector.broadcast %cst_47 : f32 to vector<16x2xf32>
    %128 = arith.subf %127, %114 : vector<16x2xf32>
    %129 = math.exp %128 : vector<16x2xf32>
    %cst_48 = arith.constant 1.000000e+00 : f32
    %130 = vector.broadcast %cst_48 : f32 to vector<16x2xf32>
    %131 = arith.addf %130, %129 : vector<16x2xf32>
    %132 = math.log %131 : vector<16x2xf32>
    %133 = arith.addf %126, %132 : vector<16x2xf32>
    %c2_i32_49 = arith.constant 2 : i32
    %134 = vector.broadcast %c2_i32_49 : i32 to vector<16x1xi32>
    %135 = arith.cmpi sgt, %4, %134 : vector<16x1xi32>
    %136 = vector.broadcast %135 : vector<16x1xi1> to vector<16x2xi1>
    %137 = arith.andi %15, %136 : vector<16x2xi1>
    %cst_50 = arith.constant 0.000000e+00 : f32
    %138 = vector.broadcast %cst_50 : f32 to vector<16x2xf32>
    %139 = arith.select %137, %133, %138 : vector<16x2xi1>, vector<16x2xf32>
    %140 = vector.shape_cast %139 : vector<16x2xf32> to vector<1x16x2xf32>
    %cst_51 = arith.constant dense<0.000000e+00> : vector<1xf32>
    %141 = vector.multi_reduction <add>, %140, %cst_51 [1, 2] : vector<1x16x2xf32> to vector<1xf32>
    %142 = vector.shape_cast %141 : vector<1xf32> to vector<1x1x1xf32>
    %143 = vector.extract %142[0, 0, 0] : f32 from vector<1x1x1xf32>
    %144 = arith.addf %101, %143 : f32
    %c3 = arith.constant 3 : index
    %c0_52 = arith.constant 0 : index
    %145 = vector.load %arg1[%c3, %c0_52] : memref<16x2xf32, #tpu.memory_space<vmem>>, vector<1x2xf32>
    %c3_53 = arith.constant 3 : index
    %c0_54 = arith.constant 0 : index
    %146 = vector.load %arg2[%c3_53, %c0_54] : memref<16x2xf32, #tpu.memory_space<vmem>>, vector<1x2xf32>
    %cst_55 = arith.constant 1.000000e+00 : f32
    %147 = vector.broadcast %cst_55 : f32 to vector<1x2xf32>
    %148 = arith.mulf %146, %147 : vector<1x2xf32>
    %149 = vector.broadcast %145 : vector<1x2xf32> to vector<16x2xf32>
    %150 = arith.subf %149, %0 : vector<16x2xf32>
    %151 = vector.broadcast %148 : vector<1x2xf32> to vector<16x2xf32>
    %152 = arith.subf %151, %3 : vector<16x2xf32>
    %153 = arith.negf %152 : vector<16x2xf32>
    %154 = math.exp %153 : vector<16x2xf32>
    %cst_56 = arith.constant 1.000000e+00 : f32
    %155 = vector.broadcast %cst_56 : f32 to vector<16x2xf32>
    %156 = arith.addf %155, %154 : vector<16x2xf32>
    %157 = arith.divf %155, %156 : vector<16x2xf32>
    %cst_57 = arith.constant 0.000000e+00 : f32
    %158 = vector.broadcast %cst_57 : f32 to vector<16x2xf32>
    %159 = arith.cmpf ogt, %150, %158 : vector<16x2xf32>
    %cst_58 = arith.constant 0.000000e+00 : f32
    %160 = vector.broadcast %cst_58 : f32 to vector<16x2xf32>
    %161 = arith.cmpf olt, %150, %160 : vector<16x2xf32>
    %cst_59 = arith.constant 0.000000e+00 : f32
    %cst_60 = arith.constant 5.000000e-01 : f32
    %162 = vector.broadcast %cst_59 : f32 to vector<16x2xf32>
    %163 = vector.broadcast %cst_60 : f32 to vector<16x2xf32>
    %164 = arith.select %161, %162, %163 : vector<16x2xi1>, vector<16x2xf32>
    %cst_61 = arith.constant 1.000000e+00 : f32
    %165 = vector.broadcast %cst_61 : f32 to vector<16x2xf32>
    %166 = arith.select %159, %165, %164 : vector<16x2xi1>, vector<16x2xf32>
    %cst_62 = arith.constant 1.000000e+00 : f32
    %167 = vector.broadcast %cst_62 : f32 to vector<16x2xf32>
    %168 = arith.subf %167, %166 : vector<16x2xf32>
    %169 = arith.mulf %157, %168 : vector<16x2xf32>
    %cst_63 = arith.constant 0.000000e+00 : f32
    %170 = vector.broadcast %cst_63 : f32 to vector<16x2xf32>
    %171 = arith.subf %170, %157 : vector<16x2xf32>
    %172 = math.exp %171 : vector<16x2xf32>
    %cst_64 = arith.constant 1.000000e+00 : f32
    %173 = vector.broadcast %cst_64 : f32 to vector<16x2xf32>
    %174 = arith.addf %173, %172 : vector<16x2xf32>
    %175 = math.log %174 : vector<16x2xf32>
    %176 = arith.addf %169, %175 : vector<16x2xf32>
    %c3_i32 = arith.constant 3 : i32
    %177 = vector.broadcast %c3_i32 : i32 to vector<16x1xi32>
    %178 = arith.cmpi sgt, %4, %177 : vector<16x1xi32>
    %179 = vector.broadcast %178 : vector<16x1xi1> to vector<16x2xi1>
    %180 = arith.andi %15, %179 : vector<16x2xi1>
    %cst_65 = arith.constant 0.000000e+00 : f32
    %181 = vector.broadcast %cst_65 : f32 to vector<16x2xf32>
    %182 = arith.select %180, %176, %181 : vector<16x2xi1>, vector<16x2xf32>
    %183 = vector.shape_cast %182 : vector<16x2xf32> to vector<1x16x2xf32>
    %cst_66 = arith.constant dense<0.000000e+00> : vector<1xf32>
    %184 = vector.multi_reduction <add>, %183, %cst_66 [1, 2] : vector<1x16x2xf32> to vector<1xf32>
    %185 = vector.shape_cast %184 : vector<1xf32> to vector<1x1x1xf32>
    %186 = vector.extract %185[0, 0, 0] : f32 from vector<1x1x1xf32>
    %187 = arith.addf %144, %186 : f32
    %188 = vector.broadcast %187 : f32 to vector<1x1x1xf32>
    %189 = vector.shape_cast %188 : vector<1x1x1xf32> to vector<1x1x1xf32>
    %190 = vector.broadcast %189 : vector<1x1x1xf32> to vector<1x1x128xf32>
    %c0_67 = arith.constant 0 : index
    %c0_68 = arith.constant 0 : index
    %c0_69 = arith.constant 0 : index
    %191 = vector.load %arg3[%c0_67, %c0_68, %c0_69] : memref<1x1x128xf32, #tpu.memory_space<vmem>>, vector<1x1x128xf32>
    tpu.vector_store %arg3[%c0_67, %c0_68, %c0_69], %190 {strides = array<i32>} : memref<1x1x128xf32, #tpu.memory_space<vmem>>, vector<1x1x128xf32>,
    return
  }
  func.func @transform_0(%arg0: i32) -> (i32, i32) {
    %c0_i32 = arith.constant 0 : i32
    %c0_i32_0 = arith.constant 0 : i32
    return %c0_i32, %arg0 : i32, i32
  }
  func.func @transform_1(%arg0: i32) -> (i32, i32) {
    %c0_i32 = arith.constant 0 : i32
    %c0_i32_0 = arith.constant 0 : i32
    return %c0_i32, %arg0 : i32, i32
  }
  func.func @transform_2(%arg0: i32) -> (i32, i32, i32) {
    %c0_i32 = arith.constant 0 : i32
    %c0_i32_0 = arith.constant 0 : i32
    %c0_i32_1 = arith.constant 0 : i32
    return %arg0, %c0_i32, %c0_i32_0 : i32, i32, i32
  }
}

</mosaic_0001>

<llo_original>
// kernel: tpu_custom_call.1
$region0: #{tpu_custom_call.1}
  #allocation0 [shape = 'u32[]', space=smem, size = 0x4, offset = 0x4, fixed_abs, tag = 'smem constant byte address 0x4 - core index']
  #allocation1 [shape = 'u32[144,128]{1,0:T(1,128)}', space=vmem, size = 0x12000, scoped, tag = 'internal scratch']
  %s0 = inlined_call_operand.vmem [shape: f32[16,2], index: 0, kind: input, shape index: {}]
  %s1 = inlined_call_operand.vmem [shape: f32[16,2], index: 1, kind: input, shape index: {}]
  %s2 = inlined_call_operand.hbm [shape: f32[1,1,128], index: 2, kind: output, shape index: {}]
  %s3 = sld [smem:[#allocation0]]
  $region18: #{tpu_custom_call.1} parent=0
    _
  %s5 = ssub.s32 1, %s3
  %s6 = scalar_select 0, %s5, %s3
  $region1: #{tpu_custom_call.1} parent=0
    #allocation2 [shape = 'u8[512]{0}', space=vmem, size = 0x400, scoped, tag = 'output window, operand 0, single buffered']
    #allocation3 [shape = 's32[1]{0}', space=sflag, size = 0x4, scoped, tag = 'scoped memory for tpu_custom_call.1']
    %7 = vsyncpa [#allocation3], 0
    // Predicated region
    $region2: #{tpu_custom_call.1} parent=1 // pred_check
      _
    $region3: #{tpu_custom_call.1} parent=1 // pred_check_branch
      %9 = sbr.rel (0) target = $region5
    $region4: #{tpu_custom_call.1} parent=1 // pred_region
      _
    $region5: #{tpu_custom_call.1} parent=1 // pred_fallthru
      _
    // Predicated region
    $region6: #{tpu_custom_call.1} parent=1 // pred_check
      _
    $region7: #{tpu_custom_call.1} parent=1 // pred_check_branch
      %11 = sbr.rel (0) target = $region9
    $region8: #{tpu_custom_call.1} parent=1 // pred_region
      _
    $region9: #{tpu_custom_call.1} parent=1 // pred_fallthru
      _
    %v12 = vld [vmem:[%s0] sm:$0xff]
    %v13 = vld [vmem:[%s0 + $0x8] sm:$0xff]
    %v14 = vld [vmem:[%s1] sm:$0xff]
    %v15 = vld [vmem:[%s1 + $0x8] sm:$0xff]
    %v16 = vlaneseq
    %v17 = vshrl.u32 %v16, 7
    %v18 = vadd.s32 %v17, 8
    %v19 = vlaneseq
    %v20 = vand.u32 %v19, 127
    %s21 = smul.u32 0, 2
    %v22 = vstv %s21
    %v23 = vadd.s32 %v22, %v20
    %vm24 = vcmp.lt.s32.totalorder %v23, 2
    %vm25 = vcmp.lt.s32.totalorder %v17, 16
    %vm26 = vcmp.lt.s32.totalorder %v18, 16
    %v27 = vsel %vm25, 1, 0
    %v28 = vsel %vm26, 1, 0
    %vm29 = vcmp.eq.s32.totalorder %v27, 1
    %vm30 = vcmp.eq.s32.totalorder %v28, 1
    %v31 = vsel %vm24, 1, 0
    %vm32 = vcmp.eq.s32.totalorder %v31, 1
    %vm33 = vmand %vm29, %vm32
    %vm34 = vmand %vm30, %vm32
    %v35 = vld [vmem:[%s0] sm:$0x1]
    %v36 = vld [vmem:[%s1] sm:$0x1]
    %v37 = vlaneseq
    %v38 = vshrl.u32 %v37, 7
    %v39 = vsub.s32 0, %v38
    %v40 = vrot.slane %v35, %v39
    %v41 = vsub.f32 %v40, %v12
    %v42 = vsub.f32 %v40, %v13
    %v43 = vlaneseq
    %v44 = vshrl.u32 %v43, 7
    %v45 = vsub.s32 0, %v44
    %v46 = vrot.slane %v36, %v45
    %v47 = vsub.f32 %v46, %v14
    %v48 = vsub.f32 %v46, %v15
    %v49 = vxor.u32 %v47, 2147483648
    %v50 = vxor.u32 %v48, 2147483648
    %v51 = vmul.f32 %v49, 1.442695
    %v52 = vpow.pop %v51
    %v53 = vmul.f32 %v50, 1.442695
    %v54 = vpow.pop %v53
    %v55 = vadd.f32 %v52, 1.0
    %v56 = vadd.f32 %v54, 1.0
    %v57 = vrcp.pop %v55
    %v58 = vmul.f32 1.0, %v57
    %v59 = vrcp.pop %v56
    %v60 = vmul.f32 1.0, %v59
    %vm61 = vcmp.gt.f32.partialorder %v41, 0.0
    %vm62 = vcmp.gt.f32.partialorder %v42, 0.0
    %vm63 = vcmp.lt.f32.partialorder %v41, 0.0
    %vm64 = vcmp.lt.f32.partialorder %v42, 0.0
    %v65 = vsel %vm63, 0.0, 0.5
    %v66 = vsel %vm64, 0.0, 0.5
    %v67 = vsel %vm61, 1.0, %v65
    %v68 = vsel %vm62, 1.0, %v66
    %v69 = vsub.f32 1.0, %v67
    %v70 = vsub.f32 1.0, %v68
    %v71 = vmul.f32 %v58, %v69
    %v72 = vmul.f32 %v60, %v70
    %v73 = vsub.f32 0.0, %v58
    %v74 = vsub.f32 0.0, %v60
    %v75 = vmul.f32 %v73, 1.442695
    %v76 = vpow.pop %v75
    %v77 = vmul.f32 %v74, 1.442695
    %v78 = vpow.pop %v77
    %v79 = vadd.f32 %v76, 1.0
    %v80 = vadd.f32 %v78, 1.0
    %v81 = vlog2.pop %v79
    %v82 = vmul.f32 %v81, 0.6931472
    %v83 = vlog2.pop %v80
    %v84 = vmul.f32 %v83, 0.6931472
    %v85 = vadd.f32 %v71, %v82
    %v86 = vadd.f32 %v72, %v84
    %vm87 = vcmp.gt.s32.totalorder %v17, 0
    %vm88 = vcmp.gt.s32.totalorder %v18, 0
    %v89 = vsel %vm87, 1, 0
    %v90 = vsel %vm88, 1, 0
    %vm91 = vcmp.eq.s32.totalorder %v89, 1
    %vm92 = vcmp.eq.s32.totalorder %v90, 1
    %vm93 = vmand %vm33, %vm91
    %vm94 = vmand %vm34, %vm92
    %v95 = vsel %vm93, %v85, 0.0
    %v96 = vsel %vm94, %v86, 0.0
    %vm97 = vcmask 15360
    %v98 = vsel %vm97, %v95, 0.0
    %v99 = vsel %vm97, %v96, 0.0
    %v100 = vadd.f32 %v98, %v99
    %101 = vadd.xlane.f32.xlu0 %v100
    %v102 = vpop.xlane.xlu0 %101
    %v103 = vrot.slane %v102, 4
    %v104 = vadd.f32 %v102, %v103
    %v105 = vrot.slane %v104, 2
    %v106 = vadd.f32 %v104, %v105
    %v107 = vrot.slane %v106, 1
    %v108 = vadd.f32 %v106, %v107
    %s109 = vtos %v108
    %s110 = sadd.f32 %s109, 0.0
    %v111 = vld [vmem:[%s0 + $0x1] sm:$0x1]
    %v112 = vld [vmem:[%s1 + $0x1] sm:$0x1]
    %v113 = vlaneseq
    %v114 = vshrl.u32 %v113, 7
    %v115 = vsub.s32 0, %v114
    %v116 = vrot.slane %v111, %v115
    %v117 = vsub.f32 %v116, %v12
    %v118 = vsub.f32 %v116, %v13
    %v119 = vlaneseq
    %v120 = vshrl.u32 %v119, 7
    %v121 = vsub.s32 0, %v120
    %v122 = vrot.slane %v112, %v121
    %v123 = vsub.f32 %v122, %v14
    %v124 = vsub.f32 %v122, %v15
    %v125 = vxor.u32 %v123, 2147483648
    %v126 = vxor.u32 %v124, 2147483648
    %v127 = vmul.f32 %v125, 1.442695
    %v128 = vpow.pop %v127
    %v129 = vmul.f32 %v126, 1.442695
    %v130 = vpow.pop %v129
    %v131 = vadd.f32 %v128, 1.0
    %v132 = vadd.f32 %v130, 1.0
    %v133 = vrcp.pop %v131
    %v134 = vmul.f32 1.0, %v133
    %v135 = vrcp.pop %v132
    %v136 = vmul.f32 1.0, %v135
    %vm137 = vcmp.gt.f32.partialorder %v117, 0.0
    %vm138 = vcmp.gt.f32.partialorder %v118, 0.0
    %vm139 = vcmp.lt.f32.partialorder %v117, 0.0
    %vm140 = vcmp.lt.f32.partialorder %v118, 0.0
    %v141 = vsel %vm139, 0.0, 0.5
    %v142 = vsel %vm140, 0.0, 0.5
    %v143 = vsel %vm137, 1.0, %v141
    %v144 = vsel %vm138, 1.0, %v142
    %v145 = vsub.f32 1.0, %v143
    %v146 = vsub.f32 1.0, %v144
    %v147 = vmul.f32 %v134, %v145
    %v148 = vmul.f32 %v136, %v146
    %v149 = vsub.f32 0.0, %v134
    %v150 = vsub.f32 0.0, %v136
    %v151 = vmul.f32 %v149, 1.442695
    %v152 = vpow.pop %v151
    %v153 = vmul.f32 %v150, 1.442695
    %v154 = vpow.pop %v153
    %v155 = vadd.f32 %v152, 1.0
    %v156 = vadd.f32 %v154, 1.0
    %v157 = vlog2.pop %v155
    %v158 = vmul.f32 %v157, 0.6931472
    %v159 = vlog2.pop %v156
    %v160 = vmul.f32 %v159, 0.6931472
    %v161 = vadd.f32 %v147, %v158
    %v162 = vadd.f32 %v148, %v160
    %vm163 = vcmp.gt.s32.totalorder %v17, 1
    %vm164 = vcmp.gt.s32.totalorder %v18, 1
    %v165 = vsel %vm163, 1, 0
    %v166 = vsel %vm164, 1, 0
    %vm167 = vcmp.eq.s32.totalorder %v165, 1
    %vm168 = vcmp.eq.s32.totalorder %v166, 1
    %vm169 = vmand %vm33, %vm167
    %vm170 = vmand %vm34, %vm168
    %v171 = vsel %vm169, %v161, 0.0
    %v172 = vsel %vm170, %v162, 0.0
    %v173 = vsel %vm97, %v171, 0.0
    %v174 = vsel %vm97, %v172, 0.0
    %v175 = vadd.f32 %v173, %v174
    %176 = vadd.xlane.f32.xlu0 %v175
    %v177 = vpop.xlane.xlu0 %176
    %v178 = vrot.slane %v177, 4
    %v179 = vadd.f32 %v177, %v178
    %v180 = vrot.slane %v179, 2
    %v181 = vadd.f32 %v179, %v180
    %v182 = vrot.slane %v181, 1
    %v183 = vadd.f32 %v181, %v182
    %s184 = vtos %v183
    %s185 = sadd.f32 %s110, %s184
    %v186 = vld [vmem:[%s0 + $0x2] sm:$0x1]
    %v187 = vld [vmem:[%s1 + $0x2] sm:$0x1]
    %v188 = vlaneseq
    %v189 = vshrl.u32 %v188, 7
    %v190 = vsub.s32 0, %v189
    %v191 = vrot.slane %v186, %v190
    %v192 = vsub.f32 %v191, %v12
    %v193 = vsub.f32 %v191, %v13
    %v194 = vlaneseq
    %v195 = vshrl.u32 %v194, 7
    %v196 = vsub.s32 0, %v195
    %v197 = vrot.slane %v187, %v196
    %v198 = vsub.f32 %v197, %v14
    %v199 = vsub.f32 %v197, %v15
    %v200 = vxor.u32 %v198, 2147483648
    %v201 = vxor.u32 %v199, 2147483648
    %v202 = vmul.f32 %v200, 1.442695
    %v203 = vpow.pop %v202
    %v204 = vmul.f32 %v201, 1.442695
    %v205 = vpow.pop %v204
    %v206 = vadd.f32 %v203, 1.0
    %v207 = vadd.f32 %v205, 1.0
    %v208 = vrcp.pop %v206
    %v209 = vmul.f32 1.0, %v208
    %v210 = vrcp.pop %v207
    %v211 = vmul.f32 1.0, %v210
    %vm212 = vcmp.gt.f32.partialorder %v192, 0.0
    %vm213 = vcmp.gt.f32.partialorder %v193, 0.0
    %vm214 = vcmp.lt.f32.partialorder %v192, 0.0
    %vm215 = vcmp.lt.f32.partialorder %v193, 0.0
    %v216 = vsel %vm214, 0.0, 0.5
    %v217 = vsel %vm215, 0.0, 0.5
    %v218 = vsel %vm212, 1.0, %v216
    %v219 = vsel %vm213, 1.0, %v217
    %v220 = vsub.f32 1.0, %v218
    %v221 = vsub.f32 1.0, %v219
    %v222 = vmul.f32 %v209, %v220
    %v223 = vmul.f32 %v211, %v221
    %v224 = vsub.f32 0.0, %v209
    %v225 = vsub.f32 0.0, %v211
    %v226 = vmul.f32 %v224, 1.442695
    %v227 = vpow.pop %v226
    %v228 = vmul.f32 %v225, 1.442695
    %v229 = vpow.pop %v228
    %v230 = vadd.f32 %v227, 1.0
    %v231 = vadd.f32 %v229, 1.0
    %v232 = vlog2.pop %v230
    %v233 = vmul.f32 %v232, 0.6931472
    %v234 = vlog2.pop %v231
    %v235 = vmul.f32 %v234, 0.6931472
    %v236 = vadd.f32 %v222, %v233
    %v237 = vadd.f32 %v223, %v235
    %vm238 = vcmp.gt.s32.totalorder %v17, 2
    %vm239 = vcmp.gt.s32.totalorder %v18, 2
    %v240 = vsel %vm238, 1, 0
    %v241 = vsel %vm239, 1, 0
    %vm242 = vcmp.eq.s32.totalorder %v240, 1
    %vm243 = vcmp.eq.s32.totalorder %v241, 1
    %vm244 = vmand %vm33, %vm242
    %vm245 = vmand %vm34, %vm243
    %v246 = vsel %vm244, %v236, 0.0
    %v247 = vsel %vm245, %v237, 0.0
    %v248 = vsel %vm97, %v246, 0.0
    %v249 = vsel %vm97, %v247, 0.0
    %v250 = vadd.f32 %v248, %v249
    %251 = vadd.xlane.f32.xlu0 %v250
    %v252 = vpop.xlane.xlu0 %251
    %v253 = vrot.slane %v252, 4
    %v254 = vadd.f32 %v252, %v253
    %v255 = vrot.slane %v254, 2
    %v256 = vadd.f32 %v254, %v255
    %v257 = vrot.slane %v256, 1
    %v258 = vadd.f32 %v256, %v257
    %s259 = vtos %v258
    %s260 = sadd.f32 %s185, %s259
    %v261 = vld [vmem:[%s0 + $0x3] sm:$0x1]
    %v262 = vld [vmem:[%s1 + $0x3] sm:$0x1]
    %v263 = vlaneseq
    %v264 = vshrl.u32 %v263, 7
    %v265 = vsub.s32 0, %v264
    %v266 = vrot.slane %v261, %v265
    %v267 = vsub.f32 %v266, %v12
    %v268 = vsub.f32 %v266, %v13
    %v269 = vlaneseq
    %v270 = vshrl.u32 %v269, 7
    %v271 = vsub.s32 0, %v270
    %v272 = vrot.slane %v262, %v271
    %v273 = vsub.f32 %v272, %v14
    %v274 = vsub.f32 %v272, %v15
    %v275 = vxor.u32 %v273, 2147483648
    %v276 = vxor.u32 %v274, 2147483648
    %v277 = vmul.f32 %v275, 1.442695
    %v278 = vpow.pop %v277
    %v279 = vmul.f32 %v276, 1.442695
    %v280 = vpow.pop %v279
    %v281 = vadd.f32 %v278, 1.0
    %v282 = vadd.f32 %v280, 1.0
    %v283 = vrcp.pop %v281
    %v284 = vmul.f32 1.0, %v283
    %v285 = vrcp.pop %v282
    %v286 = vmul.f32 1.0, %v285
    %vm287 = vcmp.gt.f32.partialorder %v267, 0.0
    %vm288 = vcmp.gt.f32.partialorder %v268, 0.0
    %vm289 = vcmp.lt.f32.partialorder %v267, 0.0
    %vm290 = vcmp.lt.f32.partialorder %v268, 0.0
    %v291 = vsel %vm289, 0.0, 0.5
    %v292 = vsel %vm290, 0.0, 0.5
    %v293 = vsel %vm287, 1.0, %v291
    %v294 = vsel %vm288, 1.0, %v292
    %v295 = vsub.f32 1.0, %v293
    %v296 = vsub.f32 1.0, %v294
    %v297 = vmul.f32 %v284, %v295
    %v298 = vmul.f32 %v286, %v296
    %v299 = vsub.f32 0.0, %v284
    %v300 = vsub.f32 0.0, %v286
    %v301 = vmul.f32 %v299, 1.442695
    %v302 = vpow.pop %v301
    %v303 = vmul.f32 %v300, 1.442695
    %v304 = vpow.pop %v303
    %v305 = vadd.f32 %v302, 1.0
    %v306 = vadd.f32 %v304, 1.0
    %v307 = vlog2.pop %v305
    %v308 = vmul.f32 %v307, 0.6931472
    %v309 = vlog2.pop %v306
    %v310 = vmul.f32 %v309, 0.6931472
    %v311 = vadd.f32 %v297, %v308
    %v312 = vadd.f32 %v298, %v310
    %vm313 = vcmp.gt.s32.totalorder %v17, 3
    %vm314 = vcmp.gt.s32.totalorder %v18, 3
    %v315 = vsel %vm313, 1, 0
    %v316 = vsel %vm314, 1, 0
    %vm317 = vcmp.eq.s32.totalorder %v315, 1
    %vm318 = vcmp.eq.s32.totalorder %v316, 1
    %vm319 = vmand %vm33, %vm317
    %vm320 = vmand %vm34, %vm318
    %v321 = vsel %vm319, %v311, 0.0
    %v322 = vsel %vm320, %v312, 0.0
    %v323 = vsel %vm97, %v321, 0.0
    %v324 = vsel %vm97, %v322, 0.0
    %v325 = vadd.f32 %v323, %v324
    %326 = vadd.xlane.f32.xlu0 %v325
    %v327 = vpop.xlane.xlu0 %326
    %v328 = vrot.slane %v327, 4
    %v329 = vadd.f32 %v327, %v328
    %v330 = vrot.slane %v329, 2
    %v331 = vadd.f32 %v329, %v330
    %v332 = vrot.slane %v331, 1
    %v333 = vadd.f32 %v331, %v332
    %s334 = vtos %v333
    %s335 = sadd.f32 %s260, %s334
    %v336 = vstv %s335
    %337 = vst [vmem:[#allocation2] sm:$0x1] %v336
    // Predicated region
    $region10: #{tpu_custom_call.1} parent=1 // pred_check
      _
    $region11: #{tpu_custom_call.1} parent=1 // pred_check_branch
      %339 = sbr.rel (0) target = $region13
    $region12: #{tpu_custom_call.1} parent=1 // pred_region
      %s341 = ssub.s32 16, 16
      %342 = vsyncadd [#allocation3], %s341
      %s344 = sshll.u32 [#allocation2], 4
      %s345 = int_to_ptr.vmem [resolvable:$true] %s344
      %347 = dma.vmem_to_hbm [thread:$0]  %s345, 16, %s2, [#allocation3]
    $region13: #{tpu_custom_call.1} parent=1 // pred_fallthru
      _
    // Predicated region
    $region14: #{tpu_custom_call.1} parent=1 // pred_check
      _
    $region15: #{tpu_custom_call.1} parent=1 // pred_check_branch
      %349 = sbr.rel (0) target = $region17
    $region16: #{tpu_custom_call.1} parent=1 // pred_region
      %350 = dma.done [#allocation3], 16
    $region17: #{tpu_custom_call.1} parent=1 // pred_fallthru
      _
    %351 = vsyncpa [#allocation3], 1

</llo_original>
